<compile_context>
chip_gen: v7x
topology: tpu7x:2x2x1
jax: 0.10.0
libtpu: 0.0.40
codegen_flags: <defaults>
</compile_context>

<pallas_src>
import functools

import jax
import jax.numpy as jnp
import numpy as np
from jax.experimental import pallas as pl
from jax.experimental.pallas import tpu as pltpu

EPS = 1e-5


def _upsample_kernel(x2_ref, x1_ref, w_ref, m_ref, o_ref, xp_ref,
                     *, H, W, C1, C2, Cout, pad):
    # x2_ref: (1, C2, H*W)        first half of the channel concat (cat((x2, x1)))
    # x1_ref: (1, C1, H*W)        second half
    # w_ref : (Cout_pad, 9*Cin)   conv weight, [ky, kx, ci] tap-major, zero-padded rows
    # m_ref : (2, H*W)            0/1 border masks for the dx=-1 / dx=+1 taps
    # o_ref : (1, Cout, H*W)      output tile (lane-dense)
    # xp_ref: (Cin, 2*pad + H*W)  zero-halo flat input scratch
    HW = H * W
    Cin = C1 + C2
    Cout_pad = w_ref.shape[0]

    # Zero ONLY the halo columns; the interior is fully overwritten below.
    zeros_halo = jnp.zeros((Cin, pad), jnp.float32)
    xp_ref[:, 0:pad] = zeros_halo
    xp_ref[:, pad + HW:2 * pad + HW] = zeros_halo

    # Channel concat written straight into the padded scratch
    # (x2 first, then x1 -- matches torch.cat((x2, x1), dim=1)).
    xp_ref[0:C2, pad:pad + HW] = x2_ref[0]
    xp_ref[C2:Cin, pad:pad + HW] = x1_ref[0]

    mask_l = m_ref[0:1, :]   # zero where col == 0     (dx = -1 taps)
    mask_r = m_ref[1:2, :]   # zero where col == W - 1 (dx = +1 taps)

    # Per-tap accumulation: (Cout_pad, Cin) @ (Cin, HW) per 3x3 tap, no im2col
    # slab.  A (dy, dx) spatial shift is a flat shift of dy*W + dx; out-of-image
    # rows read the zero halo, the row-wrap at the left/right image border is
    # killed by masking the (Cout_pad, HW) partial product.
    acc = jnp.zeros((Cout_pad, HW), jnp.float32)
    for ky in range(3):
        for kx in range(3):
            dy, dx = ky - 1, kx - 1
            off = dy * W + dx
            tap = ky * 3 + kx
            w_tap = w_ref[:, tap * Cin:(tap + 1) * Cin]        # (Cout_pad, Cin)
            s = xp_ref[:, pad + off:pad + off + HW]            # (Cin, HW)
            part = jnp.dot(w_tap, s, preferred_element_type=jnp.float32)
            if dx == -1:
                part = part * mask_l
            elif dx == 1:
                part = part * mask_r
            acc = acc + part

    # InstanceNorm2d (affine=False, biased variance, eps=1e-5) + ReLU, fused.
    # Two-pass variance (center first) for numerical stability.  The conv bias
    # is omitted: a per-channel constant cancels exactly under the mean
    # subtraction (valid only for norm='instance', affine=False).
    inv_n = jnp.float32(1.0 / HW)
    mean = jnp.sum(acc, axis=1, keepdims=True) * inv_n
    centered = acc - mean
    var = jnp.sum(centered * centered, axis=1, keepdims=True) * inv_n
    y = centered * jax.lax.rsqrt(var + EPS)
    y = jnp.maximum(y, 0.0)

    # Drop the zero-weight padded channels on store.
    o_ref[0] = y[0:Cout].astype(o_ref.dtype)


@jax.jit
def upsample_forward(x1, x2, weight, bias=None):
    """Fused ConvTranspose2d(3, stride=1, pad=1) + InstanceNorm2d + ReLU.

    x1: (N, C1, H, W), x2: (N, C2, H, W) float32 (NCHW, like PyTorch).
    weight: (in_ch, out_ch, 3, 3) ConvTranspose2d weight, in_ch = C1 + C2.
    bias: accepted for API parity but unused -- it cancels exactly under
    InstanceNorm2d(affine=False).  Returns (N, out_ch, H, W) float32.
    """
    del bias
    N, C1, H, W = x1.shape
    C2 = x2.shape[1]
    Cin = C1 + C2
    Cout = weight.shape[1]
    HW = H * W

    # Pad output channels to a full sublane group (zero weight rows, dropped
    # at the store) so the epilogue works on full vregs.
    Cout_pad = ((Cout + 7) // 8) * 8

    # ConvTranspose2d(k=3, s=1, p=1) == same-conv with spatially flipped kernel
    # and swapped (in, out) axes.  Flatten to (Cout_pad, 9*Cin), [ky, kx, ci]
    # tap-major, matching the per-tap slices taken in the kernel.
    w_conv = jnp.transpose(jnp.flip(weight, axis=(2, 3)), (1, 0, 2, 3))
    w_flat = jnp.transpose(w_conv, (0, 2, 3, 1)).reshape(Cout, 9 * Cin)
    w_flat = jnp.pad(w_flat.astype(jnp.float32),
                     ((0, Cout_pad - Cout), (0, 0)))

    # Border-column masks for the dx = -1 / +1 taps (trace-time constants;
    # tiny resident input with a constant block index).
    col = np.arange(HW, dtype=np.int32) % W
    masks = jnp.asarray(
        np.stack([(col != 0), (col != W - 1)]).astype(np.float32))   # (2, HW)

    # Free (contiguous) reshapes: NCHW -> (N, C, H*W).  No transpose/pad/concat.
    x1f = x1.reshape(N, C1, HW)
    x2f = x2.reshape(N, C2, HW)

    pad = ((W + 1 + 127) // 128) * 128   # lane-tile-aligned halo padding

    # Scoped-VMEM budget from the actual footprint, with headroom, clamped to
    # the smallest physical VMEM (v7x: 64 MiB).
    footprint_bytes = 4 * (
        Cin * (2 * pad + HW)       # xp halo-padded input scratch
        + 2 * Cin * HW             # double-buffered x1 + x2 input blocks
        + 2 * Cout * HW            # double-buffered output block
        + Cout_pad * 9 * Cin       # resident weight
        + 2 * HW                   # resident border masks
        + 4 * Cout_pad * HW        # accumulator / norm temporaries
    )
    vmem_limit = int(min(max(2 * footprint_bytes, 16 * 1024 * 1024),
                         64 * 1024 * 1024))

    kernel = functools.partial(_upsample_kernel,
                               H=H, W=W, C1=C1, C2=C2, Cout=Cout, pad=pad)

    out_flat = pl.pallas_call(
        kernel,
        out_shape=jax.ShapeDtypeStruct((N, Cout, HW), jnp.float32),
        grid_spec=pltpu.PrefetchScalarGridSpec(
            num_scalar_prefetch=0,
            grid=(N,),
            in_specs=[
                pl.BlockSpec((1, C2, HW), lambda n: (n, 0, 0)),
                pl.BlockSpec((1, C1, HW), lambda n: (n, 0, 0)),
                pl.BlockSpec((Cout_pad, 9 * Cin), lambda n: (0, 0)),
                pl.BlockSpec((2, HW), lambda n: (0, 0)),
            ],
            out_specs=pl.BlockSpec((1, Cout, HW), lambda n: (n, 0, 0)),
            scratch_shapes=[
                pltpu.VMEM((Cin, 2 * pad + HW), jnp.float32),
            ],
        ),
        compiler_params=pltpu.CompilerParams(
            dimension_semantics=("parallel",),
            vmem_limit_bytes=vmem_limit),
    )(x2f, x1f, w_flat, masks)

    return out_flat.reshape(N, Cout, H, W)


def _reference_forward(x1, x2, weight, bias):
    """Pure-JAX reference of the PyTorch module (for correctness check)."""
    x = jnp.concatenate([x2, x1], axis=1)
    w_oihw = jnp.transpose(jnp.flip(weight, axis=(2, 3)), (1, 0, 2, 3))
    y = jax.lax.conv_general_dilated(
        x, w_oihw, window_strides=(1, 1), padding=((1, 1), (1, 1)),
        dimension_numbers=('NCHW', 'OIHW', 'NCHW'))
    y = y + bias[None, :, None, None]
    mean = jnp.mean(y, axis=(2, 3), keepdims=True)
    var = jnp.mean((y - mean) ** 2, axis=(2, 3), keepdims=True)
    y = (y - mean) * jax.lax.rsqrt(var + EPS)
    return jnp.maximum(y, 0.0)


if __name__ == "__main__":
    key = jax.random.PRNGKey(0)
    k1, k2, kw, kb = jax.random.split(key, 4)

    # Small shapes consistent with the module: concat of two 4-channel maps
    # -> in_ch = 8, out_ch = 4, spatial 16x16, batch 2.
    N, C1, C2, H, W = 2, 4, 4, 16, 16
    in_ch, out_ch = C1 + C2, 4

    x1 = jax.random.normal(k1, (N, C1, H, W), jnp.float32)
    x2 = jax.random.normal(k2, (N, C2, H, W), jnp.float32)
    # ConvTranspose2d weight shape: (in_ch, out_ch, kH, kW)
    weight = 0.1 * jax.random.normal(kw, (in_ch, out_ch, 3, 3), jnp.float32)
    bias = 0.1 * jax.random.normal(kb, (out_ch,), jnp.float32)

    out = upsample_forward(x1, x2, weight, bias)
    jax.block_until_ready(out)

    ref = _reference_forward(x1, x2, weight, bias)
    out_np, ref_np = np.asarray(out), np.asarray(ref)
    if not np.allclose(out_np, ref_np, atol=2e-4, rtol=2e-4):
        err = float(np.max(np.abs(out_np - ref_np)))
        raise AssertionError(
            f"Pallas kernel output mismatch vs JAX reference (max abs err {err})")

    print("KERNEL_OK")
</pallas_src>

<mosaic_0001>
module attributes {stable_mosaic.version = 11 : i64} {
  func.func @_upsample_kernel(%arg0: i32, %arg1: memref<1x4x256xf32, #tpu.memory_space<vmem>>, %arg2: memref<1x4x256xf32, #tpu.memory_space<vmem>>, %arg3: memref<8x72xf32, #tpu.memory_space<vmem>>, %arg4: memref<2x256xf32, #tpu.memory_space<vmem>>, %arg5: memref<1x4x256xf32, #tpu.memory_space<vmem>>, %arg6: memref<8x512xf32, #tpu.memory_space<vmem>>) attributes {dimension_semantics = [#tpu.dimension_semantics<parallel>], iteration_bounds = array<i64: 2>, scalar_prefetch = 0 : i64, scratch_operands = 1 : i64, tpu.core_type = #tpu.core_type<tc>, window_params = [{transform_indices = @transform_0, window_bounds = array<i64: 1, 4, 256>}, {transform_indices = @transform_1, window_bounds = array<i64: 1, 4, 256>}, {pipeline_mode = #tpu.pipeline_mode<synchronous>, transform_indices = @transform_2, window_bounds = array<i64: 8, 72>}, {pipeline_mode = #tpu.pipeline_mode<synchronous>, transform_indices = @transform_3, window_bounds = array<i64: 2, 256>}, {transform_indices = @transform_4, window_bounds = array<i64: 1, 4, 256>}]} {
    %cst = arith.constant 0.000000e+00 : f32
    %0 = vector.broadcast %cst : f32 to vector<8x128xf32>
    %c0 = arith.constant 0 : index
    %c0_0 = arith.constant 0 : index
    %1 = vector.load %arg6[%c0, %c0_0] : memref<8x512xf32, #tpu.memory_space<vmem>>, vector<8x128xf32>
    tpu.vector_store %arg6[%c0, %c0_0], %0 {strides = array<i32>} : memref<8x512xf32, #tpu.memory_space<vmem>>, vector<8x128xf32>,
    %c0_1 = arith.constant 0 : index
    %c384 = arith.constant 384 : index
    %2 = vector.load %arg6[%c0_1, %c384] : memref<8x512xf32, #tpu.memory_space<vmem>>, vector<8x128xf32>
    tpu.vector_store %arg6[%c0_1, %c384], %0 {strides = array<i32>} : memref<8x512xf32, #tpu.memory_space<vmem>>, vector<8x128xf32>,
    %c0_2 = arith.constant 0 : index
    %c0_3 = arith.constant 0 : index
    %c0_4 = arith.constant 0 : index
    %3 = vector.load %arg1[%c0_2, %c0_3, %c0_4] : memref<1x4x256xf32, #tpu.memory_space<vmem>>, vector<1x4x256xf32>
    %4 = vector.shape_cast %3 : vector<1x4x256xf32> to vector<4x256xf32>
    %c0_5 = arith.constant 0 : index
    %c128 = arith.constant 128 : index
    %5 = vector.load %arg6[%c0_5, %c128] : memref<8x512xf32, #tpu.memory_space<vmem>>, vector<4x256xf32>
    tpu.vector_store %arg6[%c0_5, %c128], %4 {strides = array<i32>} : memref<8x512xf32, #tpu.memory_space<vmem>>, vector<4x256xf32>,
    %c0_6 = arith.constant 0 : index
    %c0_7 = arith.constant 0 : index
    %c0_8 = arith.constant 0 : index
    %6 = vector.load %arg2[%c0_6, %c0_7, %c0_8] : memref<1x4x256xf32, #tpu.memory_space<vmem>>, vector<1x4x256xf32>
    %7 = vector.shape_cast %6 : vector<1x4x256xf32> to vector<4x256xf32>
    %c4 = arith.constant 4 : index
    %c128_9 = arith.constant 128 : index
    %8 = vector.load %arg6[%c4, %c128_9] : memref<8x512xf32, #tpu.memory_space<vmem>>, vector<4x256xf32>
    tpu.vector_store %arg6[%c4, %c128_9], %7 {strides = array<i32>} : memref<8x512xf32, #tpu.memory_space<vmem>>, vector<4x256xf32>,
    %c0_10 = arith.constant 0 : index
    %c0_11 = arith.constant 0 : index
    %9 = vector.load %arg4[%c0_10, %c0_11] : memref<2x256xf32, #tpu.memory_space<vmem>>, vector<1x256xf32>
    %c1 = arith.constant 1 : index
    %c0_12 = arith.constant 0 : index
    %10 = vector.load %arg4[%c1, %c0_12] : memref<2x256xf32, #tpu.memory_space<vmem>>, vector<1x256xf32>
    %cst_13 = arith.constant 0.000000e+00 : f32
    %11 = vector.broadcast %cst_13 : f32 to vector<8x256xf32>
    %c0_14 = arith.constant 0 : index
    %c0_15 = arith.constant 0 : index
    %12 = vector.load %arg3[%c0_14, %c0_15] : memref<8x72xf32, #tpu.memory_space<vmem>>, vector<8x8xf32>
    %c0_16 = arith.constant 0 : index
    %c111 = arith.constant 111 : index
    %13 = vector.load %arg6[%c0_16, %c111] : memref<8x512xf32, #tpu.memory_space<vmem>>, vector<8x256xf32>
    %cst_17 = arith.constant dense<0.000000e+00> : vector<8x256xf32>
    %14 = tpu.matmul %12, %13, %cst_17 {dimension_numbers = #tpu.dot_dimension_numbers<[1], [0], [0], [1], [0, 0, 1, 1], [], []>} : vector<8x8xf32>, vector<8x256xf32>, vector<8x256xf32> -> vector<8x256xf32>
    %15 = vector.broadcast %9 : vector<1x256xf32> to vector<8x256xf32>
    %16 = arith.mulf %14, %15 : vector<8x256xf32>
    %17 = arith.addf %11, %16 : vector<8x256xf32>
    %c0_18 = arith.constant 0 : index
    %c8 = arith.constant 8 : index
    %18 = vector.load %arg3[%c0_18, %c8] : memref<8x72xf32, #tpu.memory_space<vmem>>, vector<8x8xf32>
    %c0_19 = arith.constant 0 : index
    %c112 = arith.constant 112 : index
    %19 = vector.load %arg6[%c0_19, %c112] : memref<8x512xf32, #tpu.memory_space<vmem>>, vector<8x256xf32>
    %cst_20 = arith.constant dense<0.000000e+00> : vector<8x256xf32>
    %20 = tpu.matmul %18, %19, %cst_20 {dimension_numbers = #tpu.dot_dimension_numbers<[1], [0], [0], [1], [0, 0, 1, 1], [], []>} : vector<8x8xf32>, vector<8x256xf32>, vector<8x256xf32> -> vector<8x256xf32>
    %21 = arith.addf %17, %20 : vector<8x256xf32>
    %c0_21 = arith.constant 0 : index
    %c16 = arith.constant 16 : index
    %22 = vector.load %arg3[%c0_21, %c16] : memref<8x72xf32, #tpu.memory_space<vmem>>, vector<8x8xf32>
    %c0_22 = arith.constant 0 : index
    %c113 = arith.constant 113 : index
    %23 = vector.load %arg6[%c0_22, %c113] : memref<8x512xf32, #tpu.memory_space<vmem>>, vector<8x256xf32>
    %cst_23 = arith.constant dense<0.000000e+00> : vector<8x256xf32>
    %24 = tpu.matmul %22, %23, %cst_23 {dimension_numbers = #tpu.dot_dimension_numbers<[1], [0], [0], [1], [0, 0, 1, 1], [], []>} : vector<8x8xf32>, vector<8x256xf32>, vector<8x256xf32> -> vector<8x256xf32>
    %25 = vector.broadcast %10 : vector<1x256xf32> to vector<8x256xf32>
    %26 = arith.mulf %24, %25 : vector<8x256xf32>
    %27 = arith.addf %21, %26 : vector<8x256xf32>
    %c0_24 = arith.constant 0 : index
    %c24 = arith.constant 24 : index
    %28 = vector.load %arg3[%c0_24, %c24] : memref<8x72xf32, #tpu.memory_space<vmem>>, vector<8x8xf32>
    %c0_25 = arith.constant 0 : index
    %c127 = arith.constant 127 : index
    %29 = vector.load %arg6[%c0_25, %c127] : memref<8x512xf32, #tpu.memory_space<vmem>>, vector<8x256xf32>
    %cst_26 = arith.constant dense<0.000000e+00> : vector<8x256xf32>
    %30 = tpu.matmul %28, %29, %cst_26 {dimension_numbers = #tpu.dot_dimension_numbers<[1], [0], [0], [1], [0, 0, 1, 1], [], []>} : vector<8x8xf32>, vector<8x256xf32>, vector<8x256xf32> -> vector<8x256xf32>
    %31 = vector.broadcast %9 : vector<1x256xf32> to vector<8x256xf32>
    %32 = arith.mulf %30, %31 : vector<8x256xf32>
    %33 = arith.addf %27, %32 : vector<8x256xf32>
    %c0_27 = arith.constant 0 : index
    %c32 = arith.constant 32 : index
    %34 = vector.load %arg3[%c0_27, %c32] : memref<8x72xf32, #tpu.memory_space<vmem>>, vector<8x8xf32>
    %c0_28 = arith.constant 0 : index
    %c128_29 = arith.constant 128 : index
    %35 = vector.load %arg6[%c0_28, %c128_29] : memref<8x512xf32, #tpu.memory_space<vmem>>, vector<8x256xf32>
    %cst_30 = arith.constant dense<0.000000e+00> : vector<8x256xf32>
    %36 = tpu.matmul %34, %35, %cst_30 {dimension_numbers = #tpu.dot_dimension_numbers<[1], [0], [0], [1], [0, 0, 1, 1], [], []>} : vector<8x8xf32>, vector<8x256xf32>, vector<8x256xf32> -> vector<8x256xf32>
    %37 = arith.addf %33, %36 : vector<8x256xf32>
    %c0_31 = arith.constant 0 : index
    %c40 = arith.constant 40 : index
    %38 = vector.load %arg3[%c0_31, %c40] : memref<8x72xf32, #tpu.memory_space<vmem>>, vector<8x8xf32>
    %c0_32 = arith.constant 0 : index
    %c129 = arith.constant 129 : index
    %39 = vector.load %arg6[%c0_32, %c129] : memref<8x512xf32, #tpu.memory_space<vmem>>, vector<8x256xf32>
    %cst_33 = arith.constant dense<0.000000e+00> : vector<8x256xf32>
    %40 = tpu.matmul %38, %39, %cst_33 {dimension_numbers = #tpu.dot_dimension_numbers<[1], [0], [0], [1], [0, 0, 1, 1], [], []>} : vector<8x8xf32>, vector<8x256xf32>, vector<8x256xf32> -> vector<8x256xf32>
    %41 = vector.broadcast %10 : vector<1x256xf32> to vector<8x256xf32>
    %42 = arith.mulf %40, %41 : vector<8x256xf32>
    %43 = arith.addf %37, %42 : vector<8x256xf32>
    %c0_34 = arith.constant 0 : index
    %c48 = arith.constant 48 : index
    %44 = vector.load %arg3[%c0_34, %c48] : memref<8x72xf32, #tpu.memory_space<vmem>>, vector<8x8xf32>
    %c0_35 = arith.constant 0 : index
    %c143 = arith.constant 143 : index
    %45 = vector.load %arg6[%c0_35, %c143] : memref<8x512xf32, #tpu.memory_space<vmem>>, vector<8x256xf32>
    %cst_36 = arith.constant dense<0.000000e+00> : vector<8x256xf32>
    %46 = tpu.matmul %44, %45, %cst_36 {dimension_numbers = #tpu.dot_dimension_numbers<[1], [0], [0], [1], [0, 0, 1, 1], [], []>} : vector<8x8xf32>, vector<8x256xf32>, vector<8x256xf32> -> vector<8x256xf32>
    %47 = vector.broadcast %9 : vector<1x256xf32> to vector<8x256xf32>
    %48 = arith.mulf %46, %47 : vector<8x256xf32>
    %49 = arith.addf %43, %48 : vector<8x256xf32>
    %c0_37 = arith.constant 0 : index
    %c56 = arith.constant 56 : index
    %50 = vector.load %arg3[%c0_37, %c56] : memref<8x72xf32, #tpu.memory_space<vmem>>, vector<8x8xf32>
    %c0_38 = arith.constant 0 : index
    %c144 = arith.constant 144 : index
    %51 = vector.load %arg6[%c0_38, %c144] : memref<8x512xf32, #tpu.memory_space<vmem>>, vector<8x256xf32>
    %cst_39 = arith.constant dense<0.000000e+00> : vector<8x256xf32>
    %52 = tpu.matmul %50, %51, %cst_39 {dimension_numbers = #tpu.dot_dimension_numbers<[1], [0], [0], [1], [0, 0, 1, 1], [], []>} : vector<8x8xf32>, vector<8x256xf32>, vector<8x256xf32> -> vector<8x256xf32>
    %53 = arith.addf %49, %52 : vector<8x256xf32>
    %c0_40 = arith.constant 0 : index
    %c64 = arith.constant 64 : index
    %54 = vector.load %arg3[%c0_40, %c64] : memref<8x72xf32, #tpu.memory_space<vmem>>, vector<8x8xf32>
    %c0_41 = arith.constant 0 : index
    %c145 = arith.constant 145 : index
    %55 = vector.load %arg6[%c0_41, %c145] : memref<8x512xf32, #tpu.memory_space<vmem>>, vector<8x256xf32>
    %cst_42 = arith.constant dense<0.000000e+00> : vector<8x256xf32>
    %56 = tpu.matmul %54, %55, %cst_42 {dimension_numbers = #tpu.dot_dimension_numbers<[1], [0], [0], [1], [0, 0, 1, 1], [], []>} : vector<8x8xf32>, vector<8x256xf32>, vector<8x256xf32> -> vector<8x256xf32>
    %57 = vector.broadcast %10 : vector<1x256xf32> to vector<8x256xf32>
    %58 = arith.mulf %56, %57 : vector<8x256xf32>
    %59 = arith.addf %53, %58 : vector<8x256xf32>
    %cst_43 = arith.constant dense<0.000000e+00> : vector<8xf32>
    %60 = vector.multi_reduction <add>, %59, %cst_43 [1] : vector<8x256xf32> to vector<8xf32>
    %61 = vector.shape_cast %60 : vector<8xf32> to vector<8x1xf32>
    %cst_44 = arith.constant 3.906250e-03 : f32
    %62 = vector.broadcast %cst_44 : f32 to vector<8x1xf32>
    %63 = arith.mulf %61, %62 : vector<8x1xf32>
    %64 = vector.broadcast %63 : vector<8x1xf32> to vector<8x256xf32>
    %65 = arith.subf %59, %64 : vector<8x256xf32>
    %66 = arith.mulf %65, %65 : vector<8x256xf32>
    %cst_45 = arith.constant dense<0.000000e+00> : vector<8xf32>
    %67 = vector.multi_reduction <add>, %66, %cst_45 [1] : vector<8x256xf32> to vector<8xf32>
    %68 = vector.shape_cast %67 : vector<8xf32> to vector<8x1xf32>
    %cst_46 = arith.constant 3.906250e-03 : f32
    %69 = vector.broadcast %cst_46 : f32 to vector<8x1xf32>
    %70 = arith.mulf %68, %69 : vector<8x1xf32>
    %cst_47 = arith.constant 9.99999974E-6 : f32
    %71 = vector.broadcast %cst_47 : f32 to vector<8x1xf32>
    %72 = arith.addf %70, %71 : vector<8x1xf32>
    %73 = math.rsqrt %72 : vector<8x1xf32>
    %74 = vector.broadcast %73 : vector<8x1xf32> to vector<8x256xf32>
    %75 = arith.mulf %65, %74 : vector<8x256xf32>
    %cst_48 = arith.constant 0.000000e+00 : f32
    %76 = vector.broadcast %cst_48 : f32 to vector<8x256xf32>
    %77 = arith.maximumf %75, %76 : vector<8x256xf32>
    %78 = vector.extract_strided_slice %77 {offsets = [0, 0], sizes = [4, 256], strides = [1, 1]} : vector<8x256xf32> to vector<4x256xf32>
    %c0_49 = arith.constant 0 : index
    %c0_50 = arith.constant 0 : index
    %c0_51 = arith.constant 0 : index
    %79 = vector.load %arg5[%c0_49, %c0_50, %c0_51] : memref<1x4x256xf32, #tpu.memory_space<vmem>>, vector<1x4x256xf32>
    %80 = vector.shape_cast %79 : vector<1x4x256xf32> to vector<4x256xf32>
    %81 = vector.shape_cast %78 : vector<4x256xf32> to vector<1x4x256xf32>
    tpu.vector_store %arg5[%c0_49, %c0_50, %c0_51], %81 {strides = array<i32>} : memref<1x4x256xf32, #tpu.memory_space<vmem>>, vector<1x4x256xf32>,
    return
  }
  func.func @transform_0(%arg0: i32) -> (i32, i32, i32) {
    %c0_i32 = arith.constant 0 : i32
    %c0_i32_0 = arith.constant 0 : i32
    %c0_i32_1 = arith.constant 0 : i32
    return %arg0, %c0_i32, %c0_i32_0 : i32, i32, i32
  }
  func.func @transform_1(%arg0: i32) -> (i32, i32, i32) {
    %c0_i32 = arith.constant 0 : i32
    %c0_i32_0 = arith.constant 0 : i32
    %c0_i32_1 = arith.constant 0 : i32
    return %arg0, %c0_i32, %c0_i32_0 : i32, i32, i32
  }
  func.func @transform_2(%arg0: i32) -> (i32, i32) {
    %c0_i32 = arith.constant 0 : i32
    %c0_i32_0 = arith.constant 0 : i32
    %c0_i32_1 = arith.constant 0 : i32
    return %c0_i32, %c0_i32_0 : i32, i32
  }
  func.func @transform_3(%arg0: i32) -> (i32, i32) {
    %c0_i32 = arith.constant 0 : i32
    %c0_i32_0 = arith.constant 0 : i32
    %c0_i32_1 = arith.constant 0 : i32
    return %c0_i32, %c0_i32_0 : i32, i32
  }
  func.func @transform_4(%arg0: i32) -> (i32, i32, i32) {
    %c0_i32 = arith.constant 0 : i32
    %c0_i32_0 = arith.constant 0 : i32
    %c0_i32_1 = arith.constant 0 : i32
    return %arg0, %c0_i32, %c0_i32_0 : i32, i32, i32
  }
}

</mosaic_0001>

<llo_original>
// kernel: upsample_forward.1
$region0: #{upsample_forward.1}
  #allocation0 [shape = 'u32[]', space=smem, size = 0x4, offset = 0x4, fixed_abs, tag = 'smem constant byte address 0x4 - core index']
  #allocation1 [shape = 'u32[144,128]{1,0:T(1,128)}', space=vmem, size = 0x12000, scoped, tag = 'internal scratch']
  #allocation2 [shape = 'f32[8,512]{1,0:T(8,128)}', space=vmem, size = 0x4000, scoped, tag = 'scratch operand']
  %s0 = inlined_call_operand.vmem [shape: f32[2,4,256], index: 0, kind: input, shape index: {}]
  %s1 = inlined_call_operand.vmem [shape: f32[2,4,256], index: 1, kind: input, shape index: {}]
  %s2 = inlined_call_operand.vmem [shape: f32[8,72], index: 2, kind: input, shape index: {}]
  %s3 = inlined_call_operand.vmem [shape: f32[2,256], index: 3, kind: input, shape index: {}]
  %s4 = inlined_call_operand.vmem [shape: f32[2,4,256], index: 4, kind: output, shape index: {}]
  %s5 = sld [smem:[#allocation0]]
  $region49: #{upsample_forward.1} parent=0
    _
  %s7 = ssub.s32 1, %s5
  %s8 = scalar_select 0, %s7, %s5
  loop: start=0, step=1, limit=4
  $region2: #{upsample_forward.1} parent=0 // loop_pre_header
    _
  $region3: #{upsample_forward.1} parent=0 // loop_header
    %s10 = sphi 0, %s14
    %p11 = scmp.ge.s32.totalorder %s10, 4
    %s20 = sphi 0, %s22
    %s23 = sphi 0, %s20
    %s24 = sphi 0, %s23
    %s40 = sphi 0, %s24
    %s46 = sphi 0, %s48
    %s49 = sphi 0, %s46
    %s50 = sphi 0, %s49
    %s66 = sphi 0, %s50
    %s70 = sphi 0, %s70
    %s72 = sphi 0, %s70
    %s73 = sphi 0, %s72
    %s87 = sphi 0, %s73
    %s91 = sphi 0, %s91
    %s93 = sphi 0, %s91
    %s94 = sphi 0, %s93
    %s108 = sphi 0, %s94
    %s114 = sphi 0, %s116
    %s117 = sphi 0, %s114
    %s118 = sphi 0, %s117
    %s134 = sphi 0, %s118
  $region4: #{upsample_forward.1} parent=0 // loop_header_branch
    %13 = sbr.rel (%p11) target = $region8
  $region5: #{upsample_forward.1} parent=0 // loop_body
    %s15 = ssub.s32 %s10, 1
    %s16 = ssub.s32 %s10, 2
    %s17 = sadd.s32 %s10, 1
    %s18 = ssub.s32 %s10, %s17
    %p19 = scmp.eq.s32.totalorder %s18, 0
    %s21 = sadd.s32 %s20, 1
    %s22 = scalar_select %p19, %s20, %s21
    %p25 = pneg %p19
    %p26 = scmp.eq.s32.totalorder %s10, 1
    %p27 = por %p25, %p26
    %p28 = scmp.ne.s32.totalorder %s20, %s23
    %p29 = scmp.eq.s32.totalorder %s10, 0
    %p30 = por %p28, %p29
    %p31 = scmp.ne.s32.totalorder %s20, %s23
    %p32 = scmp.eq.s32.totalorder %s15, 1
    %p33 = por %p31, %p32
    %p34 = scmp.ne.s32.totalorder %s23, %s24
    %p35 = scmp.eq.s32.totalorder %s15, 0
    %p36 = por %p34, %p35
    %p37 = scmp.ne.s32.totalorder %s23, %s24
    %p38 = scmp.eq.s32.totalorder %s16, 1
    %p39 = por %p37, %p38
    %p41 = scmp.ne.s32.totalorder %s24, %s40
    %p42 = scmp.eq.s32.totalorder %s16, 0
    %p43 = por %p41, %p42
    %s44 = ssub.s32 %s10, %s17
    %p45 = scmp.eq.s32.totalorder %s44, 0
    %s47 = sadd.s32 %s46, 1
    %s48 = scalar_select %p45, %s46, %s47
    %p51 = pneg %p45
    %p52 = scmp.eq.s32.totalorder %s10, 1
    %p53 = por %p51, %p52
    %p54 = scmp.ne.s32.totalorder %s46, %s49
    %p55 = scmp.eq.s32.totalorder %s10, 0
    %p56 = por %p54, %p55
    %p57 = scmp.ne.s32.totalorder %s46, %s49
    %p58 = scmp.eq.s32.totalorder %s15, 1
    %p59 = por %p57, %p58
    %p60 = scmp.ne.s32.totalorder %s49, %s50
    %p61 = scmp.eq.s32.totalorder %s15, 0
    %p62 = por %p60, %p61
    %p63 = scmp.ne.s32.totalorder %s49, %s50
    %p64 = scmp.eq.s32.totalorder %s16, 1
    %p65 = por %p63, %p64
    %p67 = scmp.ne.s32.totalorder %s50, %s66
    %p68 = scmp.eq.s32.totalorder %s16, 0
    %p69 = por %p67, %p68
    %s71 = sadd.s32 %s70, 1
    %p74 = scmp.eq.s32.totalorder %s10, 1
    %p75 = scmp.ne.s32.totalorder %s70, %s72
    %p76 = scmp.eq.s32.totalorder %s10, 0
    %p77 = por %p75, %p76
    %p78 = scmp.ne.s32.totalorder %s70, %s72
    %p79 = scmp.eq.s32.totalorder %s15, 1
    %p80 = por %p78, %p79
    %p81 = scmp.ne.s32.totalorder %s72, %s73
    %p82 = scmp.eq.s32.totalorder %s15, 0
    %p83 = por %p81, %p82
    %p84 = scmp.ne.s32.totalorder %s72, %s73
    %p85 = scmp.eq.s32.totalorder %s16, 1
    %p86 = por %p84, %p85
    %p88 = scmp.ne.s32.totalorder %s73, %s87
    %p89 = scmp.eq.s32.totalorder %s16, 0
    %p90 = por %p88, %p89
    %s92 = sadd.s32 %s91, 1
    %p95 = scmp.eq.s32.totalorder %s10, 1
    %p96 = scmp.ne.s32.totalorder %s91, %s93
    %p97 = scmp.eq.s32.totalorder %s10, 0
    %p98 = por %p96, %p97
    %p99 = scmp.ne.s32.totalorder %s91, %s93
    %p100 = scmp.eq.s32.totalorder %s15, 1
    %p101 = por %p99, %p100
    %p102 = scmp.ne.s32.totalorder %s93, %s94
    %p103 = scmp.eq.s32.totalorder %s15, 0
    %p104 = por %p102, %p103
    %p105 = scmp.ne.s32.totalorder %s93, %s94
    %p106 = scmp.eq.s32.totalorder %s16, 1
    %p107 = por %p105, %p106
    %p109 = scmp.ne.s32.totalorder %s94, %s108
    %p110 = scmp.eq.s32.totalorder %s16, 0
    %p111 = por %p109, %p110
    %s112 = ssub.s32 %s10, %s17
    %p113 = scmp.eq.s32.totalorder %s112, 0
    %s115 = sadd.s32 %s114, 1
    %s116 = scalar_select %p113, %s114, %s115
    %p119 = pneg %p113
    %p120 = scmp.eq.s32.totalorder %s10, 1
    %p121 = por %p119, %p120
    %p122 = scmp.ne.s32.totalorder %s114, %s117
    %p123 = scmp.eq.s32.totalorder %s10, 0
    %p124 = por %p122, %p123
    %p125 = scmp.ne.s32.totalorder %s114, %s117
    %p126 = scmp.eq.s32.totalorder %s15, 1
    %p127 = por %p125, %p126
    %p128 = scmp.ne.s32.totalorder %s117, %s118
    %p129 = scmp.eq.s32.totalorder %s15, 0
    %p130 = por %p128, %p129
    %p131 = scmp.ne.s32.totalorder %s117, %s118
    %p132 = scmp.eq.s32.totalorder %s16, 1
    %p133 = por %p131, %p132
    %p135 = scmp.ne.s32.totalorder %s118, %s134
    %p136 = scmp.eq.s32.totalorder %s16, 0
    %p137 = por %p135, %p136
    %p138 = scmp.le.s32.totalorder 1, %s10
    %p139 = scmp.lt.s32.totalorder %s10, 3
    %p140 = pnand %p138, %p139
    %p141 = pneg %p140
    // Predicated region
    $region9: #{upsample_forward.1} parent=5 // pred_check
      _
    $region10: #{upsample_forward.1} parent=5 // pred_check_branch
      %143 = sbr.rel (%p140) target = $region12
    $region11: #{upsample_forward.1} parent=5 // pred_region
      %s144 = ssub.s32 %s10, 1
      // Predicated region
      $region13: #{upsample_forward.1} parent=11 // pred_check
        %p145 = pneg %p83
      $region14: #{upsample_forward.1} parent=11 // pred_check_branch
        %147 = sbr.rel (%p145) target = $region16
      $region15: #{upsample_forward.1} parent=11 // pred_region
        _
      $region16: #{upsample_forward.1} parent=11 // pred_fallthru
        _
      // Predicated region
      $region17: #{upsample_forward.1} parent=11 // pred_check
        %p148 = pneg %p104
      $region18: #{upsample_forward.1} parent=11 // pred_check_branch
        %150 = sbr.rel (%p148) target = $region20
      $region19: #{upsample_forward.1} parent=11 // pred_region
        _
      $region20: #{upsample_forward.1} parent=11 // pred_fallthru
        _
    $region12: #{upsample_forward.1} parent=5 // pred_fallthru
      _
    %p151 = scmp.lt.s32.totalorder %s10, 2
    // Predicated region
    $region21: #{upsample_forward.1} parent=5 // pred_check
      %p152 = pneg %p151
    $region22: #{upsample_forward.1} parent=5 // pred_check_branch
      %154 = sbr.rel (%p152) target = $region24
    $region23: #{upsample_forward.1} parent=5 // pred_region
      // Predicated region
      $region25: #{upsample_forward.1} parent=23 // pred_check
        %p155 = pneg %p30
      $region26: #{upsample_forward.1} parent=23 // pred_check_branch
        %157 = sbr.rel (%p155) target = $region28
      $region27: #{upsample_forward.1} parent=23 // pred_region
        %p158 = scmp.lt.s32.totalorder %s10, 1
        %s159 = scalar_select %p158, %s10, 1
        %s160 = smul.addr %s159, 2
        %s161 = smul.addr %s160, 4
        %s162 = scalar_lea.vmem %s0, %s161
      $region28: #{upsample_forward.1} parent=23 // pred_fallthru
        _
      // Predicated region
      $region29: #{upsample_forward.1} parent=23 // pred_check
        %p163 = pneg %p56
      $region30: #{upsample_forward.1} parent=23 // pred_check_branch
        %165 = sbr.rel (%p163) target = $region32
      $region31: #{upsample_forward.1} parent=23 // pred_region
        %p166 = scmp.lt.s32.totalorder %s10, 1
        %s167 = scalar_select %p166, %s10, 1
        %s168 = smul.addr %s167, 2
        %s169 = smul.addr %s168, 4
        %s170 = scalar_lea.vmem %s1, %s169
      $region32: #{upsample_forward.1} parent=23 // pred_fallthru
        _
    $region24: #{upsample_forward.1} parent=5 // pred_fallthru
      _
    %p171 = scmp.le.s32.totalorder 1, %s10
    %p172 = scmp.lt.s32.totalorder %s10, 3
    %p173 = pnand %p171, %p172
    %p174 = pneg %p173
    // Predicated region
    $region33: #{upsample_forward.1} parent=5 // pred_check
      _
    $region34: #{upsample_forward.1} parent=5 // pred_check_branch
      %176 = sbr.rel (%p173) target = $region36
    $region35: #{upsample_forward.1} parent=5 // pred_region
      %s177 = ssub.s32 %s10, 1
      %p178 = scmp.lt.s32.totalorder %s15, 1
      %s179 = scalar_select %p178, %s15, 1
      %s180 = smul.addr %s179, 2
      %s181 = smul.addr %s180, 4
      %s182 = scalar_lea.vmem %s0, %s181
      %p183 = pneg %p36
      %p184 = pneg %p33
      %p185 = scmp.lt.s32.totalorder %s15, 1
      %s186 = scalar_select %p185, %s15, 1
      %s187 = smul.addr %s186, 2
      %s188 = smul.addr %s187, 4
      %s189 = scalar_lea.vmem %s1, %s188
      %p190 = pneg %p62
      %p191 = pneg %p59
      %p192 = pneg %p83
      %p193 = pneg %p80
      %p194 = pneg %p104
      %p195 = pneg %p101
      %p196 = pneg %p130
      %p197 = pneg %p127
      %p198 = scmp.lt.s32.totalorder %s15, 1
      %s199 = scalar_select %p198, %s15, 1
      %s200 = smul.addr %s199, 2
      %s201 = smul.addr %s200, 4
      %s202 = scalar_lea.vmem %s4, %s201
      %p203 = scmp.lt.s32.totalorder %s15, 1
      %s204 = scalar_select %p203, %s15, 1
      %s205 = smul.addr %s204, 2
      %s206 = smul.addr %s205, 4
      %s207 = scalar_lea.vmem %s0, %s206
      %p208 = scmp.lt.s32.totalorder %s15, 1
      %s209 = scalar_select %p208, %s15, 1
      %s210 = smul.addr %s209, 2
      %s211 = smul.addr %s210, 4
      %s212 = scalar_lea.vmem %s1, %s211
      %p213 = scmp.lt.s32.totalorder %s15, 1
      %s214 = scalar_select %p213, %s15, 1
      %s215 = smul.addr %s214, 2
      %s216 = smul.addr %s215, 4
      %s217 = scalar_lea.vmem %s4, %s216
      %218 = vst [vmem:[#allocation2] sm:$0xff] 0.0
      %219 = vst [vmem:[#allocation2 + $0x18] sm:$0xff] 0.0
      %v220 = vld [vmem:[%s207] sm:$0xff]
      %v222 = vcombine.high %v220, %v220
      %224 = vst [vmem:[#allocation2 + $0x8] sm:$0xf] %v220
      %225 = vst [vmem:[#allocation2 + $0x10] sm:$0xf] %v222
      %v226 = vld [vmem:[%s212] sm:$0xff]
      %v228 = vcombine.low %v226, %v226
      %230 = vst [vmem:[#allocation2 + $0x8] sm:$0xf0] %v228
      %231 = vst [vmem:[#allocation2 + $0x10] sm:$0xf0] %v226
      %v232 = vld [vmem:[%s3] ss:$2 sm:$0x3]
      %s233 = scalar_lea.vmem %s3, 1
      %v234 = vld [vmem:[%s233] ss:$2 sm:$0x3]
      %v235 = vld [vmem:[%s2] sm:$0xff]
      %v236 = vld [vmem:[#allocation2] sm:$0xff]
      %v237 = vld [vmem:[#allocation2 + $0x8] sm:$0xff]
      %v238 = vld [vmem:[#allocation2 + $0x10] sm:$0xff]
      %242 = vrot.lane.b32.xlu0 %v236, 17
      %v243 = vpop.permute.xlu0 %242
      %244 = vrot.lane.b32.xlu0 %v237, 17
      %v245 = vpop.permute.xlu0 %244
      %246 = vrot.lane.b32.xlu0 %v238, 17
      %v247 = vpop.permute.xlu0 %246
      %vm248 = vcmask 138240
      %v249 = vsel %vm248, %v243, %v245
      %v250 = vsel %vm248, %v245, %v247
      %vm253 = vcmask 64512
      %v255 = vsel %vm253, %v235, 0
      %257 = vmatprep.subr.mxu0 %v250
      %258 = vmatpush1.msra.mxu0 %v249
      %259 = vmatprep.subr.mxu0 0.0
      %260 = vmatpush1.msra.mxu0 0.0
      %261 = vmatprep.subr.mxu0 0.0
      %262 = vmatpush1.msra.mxu0 0.0
      %263 = vmatprep.subr.mxu0 0.0
      %264 = vmatpush1.msra.mxu0 0.0
      %265 = vmatprep.subr.mxu0 0.0
      %266 = vmatpush1.msra.mxu0 0.0
      %267 = vmatprep.subr.mxu0 0.0
      %268 = vmatpush1.msra.mxu0 0.0
      %269 = vmatprep.subr.mxu0 0.0
      %270 = vmatpush1.msra.mxu0 0.0
      %271 = vmatprep.subr.mxu0 0.0
      %272 = vmatpush1.msra.mxu0 0.0
      %273 = vmatprep.subr.mxu0 0.0
      %274 = vmatpush1.msra.mxu0 0.0
      %275 = vmatprep.subr.mxu0 0.0
      %276 = vmatpush1.msra.mxu0 0.0
      %277 = vmatprep.subr.mxu0 0.0
      %278 = vmatpush1.msra.mxu0 0.0
      %279 = vmatprep.subr.mxu0 0.0
      %280 = vmatpush1.msra.mxu0 0.0
      %281 = vmatprep.subr.mxu0 0.0
      %282 = vmatpush1.msra.mxu0 0.0
      %283 = vmatprep.subr.mxu0 0.0
      %284 = vmatpush1.msra.mxu0 0.0
      %285 = vmatprep.subr.mxu0 0.0
      %286 = vmatpush1.msra.mxu0 0.0
      %287 = vmatprep.subr.mxu0 0.0
      %288 = vmatpush1.msra.mxu0 0.0
      %289 = vmatprep.subr.mxu0 0.0
      %290 = vmatpush1.msra.mxu0 0.0
      %291 = vmatprep.subr.mxu0 0.0
      %292 = vmatpush1.msra.mxu0 0.0
      %293 = vmatprep.subr.mxu0 0.0
      %294 = vmatpush1.msra.mxu0 0.0
      %295 = vmatprep.subr.mxu0 0.0
      %296 = vmatpush1.msra.mxu0 0.0
      %297 = vmatprep.subr.mxu0 0.0
      %298 = vmatpush1.msra.mxu0 0.0
      %299 = vmatprep.subr.mxu0 0.0
      %300 = vmatpush1.msra.mxu0 0.0
      %301 = vmatprep.subr.mxu0 0.0
      %302 = vmatpush1.msra.mxu0 0.0
      %303 = vmatprep.subr.mxu0 0.0
      %304 = vmatpush1.msra.mxu0 0.0
      %305 = vmatprep.subr.mxu0 0.0
      %306 = vmatpush1.msra.mxu0 0.0
      %307 = vmatprep.subr.mxu0 0.0
      %308 = vmatpush1.msra.mxu0 0.0
      %309 = vmatprep.subr.mxu0 0.0
      %310 = vmatpush1.msra.mxu0 0.0
      %311 = vmatprep.subr.mxu0 0.0
      %312 = vmatpush1.msra.mxu0 0.0
      %313 = vmatprep.subr.mxu0 0.0
      %314 = vmatpush1.msra.mxu0 0.0
      %315 = vmatprep.subr.mxu0 0.0
      %316 = vmatpush1.msra.mxu0 0.0
      %317 = vmatprep.subr.mxu0 0.0
      %318 = vmatpush1.msra.mxu0 0.0
      %319 = vmatprep.subr.mxu0 0.0
      %320 = vmatpush1.msra.mxu0 0.0
      %321 = vmatprep.mubr.f32.mxu0 0.0
      %322 = vmatmul.mubr.f32.gmra.mrb[0].mxu0 %v255
      %v323 = vpop.f32.mrb[0].mxu0
      %v324 = vadd.f32 0.0, %v323
      %v325 = vpop.f32.mrb[0].mxu0
      %v326 = vadd.f32 0.0, %v325
      %327 = vdwg.mxu0
      %v329 = vlaneseq
      %v330 = vshrl.u32 %v329, 7
      %v331 = vsub.s32 0, %v330
      %v332 = vrot.slane %v232, %v331
      %v333 = vlaneseq
      %v334 = vshrl.u32 %v333, 7
      %v335 = vsub.s32 1, %v334
      %v336 = vrot.slane %v232, %v335
      %v339 = vmul.f32 %v324, %v332
      %v340 = vmul.f32 %v326, %v336
      %v341 = vadd.f32 %v339, 0.0
      %v342 = vadd.f32 %v340, 0.0
      %343 = vrot.lane.b32.xlu0 %v235, 120
      %v344 = vpop.permute.xlu0 %343
      %345 = vrot.lane.b32.xlu0 %v236, 16
      %v346 = vpop.permute.xlu0 %345
      %347 = vrot.lane.b32.xlu0 %v237, 16
      %v348 = vpop.permute.xlu0 %347
      %349 = vrot.lane.b32.xlu0 %v238, 16
      %v350 = vpop.permute.xlu0 %349
      %vm351 = vcmask 130048
      %v352 = vsel %vm351, %v346, %v348
      %v353 = vsel %vm351, %v348, %v350
      %v356 = vsel %vm253, %v344, 0
      %358 = vmatprep.subr.mxu0 %v353
      %359 = vmatpush1.msra.mxu0 %v352
      %360 = vmatprep.subr.mxu0 0.0
      %361 = vmatpush1.msra.mxu0 0.0
      %362 = vmatprep.subr.mxu0 0.0
      %363 = vmatpush1.msra.mxu0 0.0
      %364 = vmatprep.subr.mxu0 0.0
      %365 = vmatpush1.msra.mxu0 0.0
      %366 = vmatprep.subr.mxu0 0.0
      %367 = vmatpush1.msra.mxu0 0.0
      %368 = vmatprep.subr.mxu0 0.0
      %369 = vmatpush1.msra.mxu0 0.0
      %370 = vmatprep.subr.mxu0 0.0
      %371 = vmatpush1.msra.mxu0 0.0
      %372 = vmatprep.subr.mxu0 0.0
      %373 = vmatpush1.msra.mxu0 0.0
      %374 = vmatprep.subr.mxu0 0.0
      %375 = vmatpush1.msra.mxu0 0.0
      %376 = vmatprep.subr.mxu0 0.0
      %377 = vmatpush1.msra.mxu0 0.0
      %378 = vmatprep.subr.mxu0 0.0
      %379 = vmatpush1.msra.mxu0 0.0
      %380 = vmatprep.subr.mxu0 0.0
      %381 = vmatpush1.msra.mxu0 0.0
      %382 = vmatprep.subr.mxu0 0.0
      %383 = vmatpush1.msra.mxu0 0.0
      %384 = vmatprep.subr.mxu0 0.0
      %385 = vmatpush1.msra.mxu0 0.0
      %386 = vmatprep.subr.mxu0 0.0
      %387 = vmatpush1.msra.mxu0 0.0
      %388 = vmatprep.subr.mxu0 0.0
      %389 = vmatpush1.msra.mxu0 0.0
      %390 = vmatprep.subr.mxu0 0.0
      %391 = vmatpush1.msra.mxu0 0.0
      %392 = vmatprep.subr.mxu0 0.0
      %393 = vmatpush1.msra.mxu0 0.0
      %394 = vmatprep.subr.mxu0 0.0
      %395 = vmatpush1.msra.mxu0 0.0
      %396 = vmatprep.subr.mxu0 0.0
      %397 = vmatpush1.msra.mxu0 0.0
      %398 = vmatprep.subr.mxu0 0.0
      %399 = vmatpush1.msra.mxu0 0.0
      %400 = vmatprep.subr.mxu0 0.0
      %401 = vmatpush1.msra.mxu0 0.0
      %402 = vmatprep.subr.mxu0 0.0
      %403 = vmatpush1.msra.mxu0 0.0
      %404 = vmatprep.subr.mxu0 0.0
      %405 = vmatpush1.msra.mxu0 0.0
      %406 = vmatprep.subr.mxu0 0.0
      %407 = vmatpush1.msra.mxu0 0.0
      %408 = vmatprep.subr.mxu0 0.0
      %409 = vmatpush1.msra.mxu0 0.0
      %410 = vmatprep.subr.mxu0 0.0
      %411 = vmatpush1.msra.mxu0 0.0
      %412 = vmatprep.subr.mxu0 0.0
      %413 = vmatpush1.msra.mxu0 0.0
      %414 = vmatprep.subr.mxu0 0.0
      %415 = vmatpush1.msra.mxu0 0.0
      %416 = vmatprep.subr.mxu0 0.0
      %417 = vmatpush1.msra.mxu0 0.0
      %418 = vmatprep.subr.mxu0 0.0
      %419 = vmatpush1.msra.mxu0 0.0
      %420 = vmatprep.subr.mxu0 0.0
      %421 = vmatpush1.msra.mxu0 0.0
      %422 = vmatprep.mubr.f32.mxu0 0.0
      %423 = vmatmul.mubr.f32.gmra.mrb[0].mxu0 %v356
      %v424 = vpop.f32.mrb[0].mxu0
      %v425 = vadd.f32 0.0, %v424
      %v426 = vpop.f32.mrb[0].mxu0
      %v427 = vadd.f32 0.0, %v426
      %428 = vdwg.mxu0
      %v429 = vadd.f32 %v341, %v425
      %v430 = vadd.f32 %v342, %v427
      %431 = vrot.lane.b32.xlu0 %v235, 112
      %v432 = vpop.permute.xlu0 %431
      %433 = vrot.lane.b32.xlu0 %v236, 15
      %v434 = vpop.permute.xlu0 %433
      %435 = vrot.lane.b32.xlu0 %v237, 15
      %v436 = vpop.permute.xlu0 %435
      %437 = vrot.lane.b32.xlu0 %v238, 15
      %v438 = vpop.permute.xlu0 %437
      %vm439 = vcmask 121856
      %v440 = vsel %vm439, %v434, %v436
      %v441 = vsel %vm439, %v436, %v438
      %v444 = vsel %vm253, %v432, 0
      %446 = vmatprep.subr.mxu0 %v441
      %447 = vmatpush1.msra.mxu0 %v440
      %448 = vmatprep.subr.mxu0 0.0
      %449 = vmatpush1.msra.mxu0 0.0
      %450 = vmatprep.subr.mxu0 0.0
      %451 = vmatpush1.msra.mxu0 0.0
      %452 = vmatprep.subr.mxu0 0.0
      %453 = vmatpush1.msra.mxu0 0.0
      %454 = vmatprep.subr.mxu0 0.0
      %455 = vmatpush1.msra.mxu0 0.0
      %456 = vmatprep.subr.mxu0 0.0
      %457 = vmatpush1.msra.mxu0 0.0
      %458 = vmatprep.subr.mxu0 0.0
      %459 = vmatpush1.msra.mxu0 0.0
      %460 = vmatprep.subr.mxu0 0.0
      %461 = vmatpush1.msra.mxu0 0.0
      %462 = vmatprep.subr.mxu0 0.0
      %463 = vmatpush1.msra.mxu0 0.0
      %464 = vmatprep.subr.mxu0 0.0
      %465 = vmatpush1.msra.mxu0 0.0
      %466 = vmatprep.subr.mxu0 0.0
      %467 = vmatpush1.msra.mxu0 0.0
      %468 = vmatprep.subr.mxu0 0.0
      %469 = vmatpush1.msra.mxu0 0.0
      %470 = vmatprep.subr.mxu0 0.0
      %471 = vmatpush1.msra.mxu0 0.0
      %472 = vmatprep.subr.mxu0 0.0
      %473 = vmatpush1.msra.mxu0 0.0
      %474 = vmatprep.subr.mxu0 0.0
      %475 = vmatpush1.msra.mxu0 0.0
      %476 = vmatprep.subr.mxu0 0.0
      %477 = vmatpush1.msra.mxu0 0.0
      %478 = vmatprep.subr.mxu0 0.0
      %479 = vmatpush1.msra.mxu0 0.0
      %480 = vmatprep.subr.mxu0 0.0
      %481 = vmatpush1.msra.mxu0 0.0
      %482 = vmatprep.subr.mxu0 0.0
      %483 = vmatpush1.msra.mxu0 0.0
      %484 = vmatprep.subr.mxu0 0.0
      %485 = vmatpush1.msra.mxu0 0.0
      %486 = vmatprep.subr.mxu0 0.0
      %487 = vmatpush1.msra.mxu0 0.0
      %488 = vmatprep.subr.mxu0 0.0
      %489 = vmatpush1.msra.mxu0 0.0
      %490 = vmatprep.subr.mxu0 0.0
      %491 = vmatpush1.msra.mxu0 0.0
      %492 = vmatprep.subr.mxu0 0.0
      %493 = vmatpush1.msra.mxu0 0.0
      %494 = vmatprep.subr.mxu0 0.0
      %495 = vmatpush1.msra.mxu0 0.0
      %496 = vmatprep.subr.mxu0 0.0
      %497 = vmatpush1.msra.mxu0 0.0
      %498 = vmatprep.subr.mxu0 0.0
      %499 = vmatpush1.msra.mxu0 0.0
      %500 = vmatprep.subr.mxu0 0.0
      %501 = vmatpush1.msra.mxu0 0.0
      %502 = vmatprep.subr.mxu0 0.0
      %503 = vmatpush1.msra.mxu0 0.0
      %504 = vmatprep.subr.mxu0 0.0
      %505 = vmatpush1.msra.mxu0 0.0
      %506 = vmatprep.subr.mxu0 0.0
      %507 = vmatpush1.msra.mxu0 0.0
      %508 = vmatprep.subr.mxu0 0.0
      %509 = vmatpush1.msra.mxu0 0.0
      %510 = vmatprep.mubr.f32.mxu0 0.0
      %511 = vmatmul.mubr.f32.gmra.mrb[0].mxu0 %v444
      %v512 = vpop.f32.mrb[0].mxu0
      %v513 = vadd.f32 0.0, %v512
      %v514 = vpop.f32.mrb[0].mxu0
      %v515 = vadd.f32 0.0, %v514
      %516 = vdwg.mxu0
      %v518 = vlaneseq
      %v519 = vshrl.u32 %v518, 7
      %v520 = vsub.s32 0, %v519
      %v521 = vrot.slane %v234, %v520
      %v522 = vlaneseq
      %v523 = vshrl.u32 %v522, 7
      %v524 = vsub.s32 1, %v523
      %v525 = vrot.slane %v234, %v524
      %v528 = vmul.f32 %v513, %v521
      %v529 = vmul.f32 %v515, %v525
      %v530 = vadd.f32 %v429, %v528
      %v531 = vadd.f32 %v430, %v529
      %532 = vrot.lane.b32.xlu0 %v235, 104
      %v533 = vpop.permute.xlu0 %532
      %534 = vrot.lane.b32.xlu0 %v236, 1
      %v535 = vpop.permute.xlu0 %534
      %536 = vrot.lane.b32.xlu0 %v237, 1
      %v537 = vpop.permute.xlu0 %536
      %538 = vrot.lane.b32.xlu0 %v238, 1
      %v539 = vpop.permute.xlu0 %538
      %vm540 = vcmask 7168
      %v541 = vsel %vm540, %v535, %v537
      %v542 = vsel %vm540, %v537, %v539
      %v545 = vsel %vm253, %v533, 0
      %547 = vmatprep.subr.mxu0 %v542
      %548 = vmatpush1.msra.mxu0 %v541
      %549 = vmatprep.subr.mxu0 0.0
      %550 = vmatpush1.msra.mxu0 0.0
      %551 = vmatprep.subr.mxu0 0.0
      %552 = vmatpush1.msra.mxu0 0.0
      %553 = vmatprep.subr.mxu0 0.0
      %554 = vmatpush1.msra.mxu0 0.0
      %555 = vmatprep.subr.mxu0 0.0
      %556 = vmatpush1.msra.mxu0 0.0
      %557 = vmatprep.subr.mxu0 0.0
      %558 = vmatpush1.msra.mxu0 0.0
      %559 = vmatprep.subr.mxu0 0.0
      %560 = vmatpush1.msra.mxu0 0.0
      %561 = vmatprep.subr.mxu0 0.0
      %562 = vmatpush1.msra.mxu0 0.0
      %563 = vmatprep.subr.mxu0 0.0
      %564 = vmatpush1.msra.mxu0 0.0
      %565 = vmatprep.subr.mxu0 0.0
      %566 = vmatpush1.msra.mxu0 0.0
      %567 = vmatprep.subr.mxu0 0.0
      %568 = vmatpush1.msra.mxu0 0.0
      %569 = vmatprep.subr.mxu0 0.0
      %570 = vmatpush1.msra.mxu0 0.0
      %571 = vmatprep.subr.mxu0 0.0
      %572 = vmatpush1.msra.mxu0 0.0
      %573 = vmatprep.subr.mxu0 0.0
      %574 = vmatpush1.msra.mxu0 0.0
      %575 = vmatprep.subr.mxu0 0.0
      %576 = vmatpush1.msra.mxu0 0.0
      %577 = vmatprep.subr.mxu0 0.0
      %578 = vmatpush1.msra.mxu0 0.0
      %579 = vmatprep.subr.mxu0 0.0
      %580 = vmatpush1.msra.mxu0 0.0
      %581 = vmatprep.subr.mxu0 0.0
      %582 = vmatpush1.msra.mxu0 0.0
      %583 = vmatprep.subr.mxu0 0.0
      %584 = vmatpush1.msra.mxu0 0.0
      %585 = vmatprep.subr.mxu0 0.0
      %586 = vmatpush1.msra.mxu0 0.0
      %587 = vmatprep.subr.mxu0 0.0
      %588 = vmatpush1.msra.mxu0 0.0
      %589 = vmatprep.subr.mxu0 0.0
      %590 = vmatpush1.msra.mxu0 0.0
      %591 = vmatprep.subr.mxu0 0.0
      %592 = vmatpush1.msra.mxu0 0.0
      %593 = vmatprep.subr.mxu0 0.0
      %594 = vmatpush1.msra.mxu0 0.0
      %595 = vmatprep.subr.mxu0 0.0
      %596 = vmatpush1.msra.mxu0 0.0
      %597 = vmatprep.subr.mxu0 0.0
      %598 = vmatpush1.msra.mxu0 0.0
      %599 = vmatprep.subr.mxu0 0.0
      %600 = vmatpush1.msra.mxu0 0.0
      %601 = vmatprep.subr.mxu0 0.0
      %602 = vmatpush1.msra.mxu0 0.0
      %603 = vmatprep.subr.mxu0 0.0
      %604 = vmatpush1.msra.mxu0 0.0
      %605 = vmatprep.subr.mxu0 0.0
      %606 = vmatpush1.msra.mxu0 0.0
      %607 = vmatprep.subr.mxu0 0.0
      %608 = vmatpush1.msra.mxu0 0.0
      %609 = vmatprep.subr.mxu0 0.0
      %610 = vmatpush1.msra.mxu0 0.0
      %611 = vmatprep.mubr.f32.mxu0 0.0
      %612 = vmatmul.mubr.f32.gmra.mrb[0].mxu0 %v545
      %v613 = vpop.f32.mrb[0].mxu0
      %v614 = vadd.f32 0.0, %v613
      %v615 = vpop.f32.mrb[0].mxu0
      %v616 = vadd.f32 0.0, %v615
      %617 = vdwg.mxu0
      %v618 = vmul.f32 %v614, %v332
      %v619 = vmul.f32 %v616, %v336
      %v620 = vadd.f32 %v530, %v618
      %v621 = vadd.f32 %v531, %v619
      %622 = vrot.lane.b32.xlu0 %v235, 96
      %v623 = vpop.permute.xlu0 %622
      %v624 = vsel %vm253, %v623, 0
      %626 = vmatprep.subr.mxu0 %v238
      %627 = vmatpush1.msra.mxu0 %v237
      %628 = vmatprep.subr.mxu0 0.0
      %629 = vmatpush1.msra.mxu0 0.0
      %630 = vmatprep.subr.mxu0 0.0
      %631 = vmatpush1.msra.mxu0 0.0
      %632 = vmatprep.subr.mxu0 0.0
      %633 = vmatpush1.msra.mxu0 0.0
      %634 = vmatprep.subr.mxu0 0.0
      %635 = vmatpush1.msra.mxu0 0.0
      %636 = vmatprep.subr.mxu0 0.0
      %637 = vmatpush1.msra.mxu0 0.0
      %638 = vmatprep.subr.mxu0 0.0
      %639 = vmatpush1.msra.mxu0 0.0
      %640 = vmatprep.subr.mxu0 0.0
      %641 = vmatpush1.msra.mxu0 0.0
      %642 = vmatprep.subr.mxu0 0.0
      %643 = vmatpush1.msra.mxu0 0.0
      %644 = vmatprep.subr.mxu0 0.0
      %645 = vmatpush1.msra.mxu0 0.0
      %646 = vmatprep.subr.mxu0 0.0
      %647 = vmatpush1.msra.mxu0 0.0
      %648 = vmatprep.subr.mxu0 0.0
      %649 = vmatpush1.msra.mxu0 0.0
      %650 = vmatprep.subr.mxu0 0.0
      %651 = vmatpush1.msra.mxu0 0.0
      %652 = vmatprep.subr.mxu0 0.0
      %653 = vmatpush1.msra.mxu0 0.0
      %654 = vmatprep.subr.mxu0 0.0
      %655 = vmatpush1.msra.mxu0 0.0
      %656 = vmatprep.subr.mxu0 0.0
      %657 = vmatpush1.msra.mxu0 0.0
      %658 = vmatprep.subr.mxu0 0.0
      %659 = vmatpush1.msra.mxu0 0.0
      %660 = vmatprep.subr.mxu0 0.0
      %661 = vmatpush1.msra.mxu0 0.0
      %662 = vmatprep.subr.mxu0 0.0
      %663 = vmatpush1.msra.mxu0 0.0
      %664 = vmatprep.subr.mxu0 0.0
      %665 = vmatpush1.msra.mxu0 0.0
      %666 = vmatprep.subr.mxu0 0.0
      %667 = vmatpush1.msra.mxu0 0.0
      %668 = vmatprep.subr.mxu0 0.0
      %669 = vmatpush1.msra.mxu0 0.0
      %670 = vmatprep.subr.mxu0 0.0
      %671 = vmatpush1.msra.mxu0 0.0
      %672 = vmatprep.subr.mxu0 0.0
      %673 = vmatpush1.msra.mxu0 0.0
      %674 = vmatprep.subr.mxu0 0.0
      %675 = vmatpush1.msra.mxu0 0.0
      %676 = vmatprep.subr.mxu0 0.0
      %677 = vmatpush1.msra.mxu0 0.0
      %678 = vmatprep.subr.mxu0 0.0
      %679 = vmatpush1.msra.mxu0 0.0
      %680 = vmatprep.subr.mxu0 0.0
      %681 = vmatpush1.msra.mxu0 0.0
      %682 = vmatprep.subr.mxu0 0.0
      %683 = vmatpush1.msra.mxu0 0.0
      %684 = vmatprep.subr.mxu0 0.0
      %685 = vmatpush1.msra.mxu0 0.0
      %686 = vmatprep.subr.mxu0 0.0
      %687 = vmatpush1.msra.mxu0 0.0
      %688 = vmatprep.subr.mxu0 0.0
      %689 = vmatpush1.msra.mxu0 0.0
      %690 = vmatprep.mubr.f32.mxu0 0.0
      %691 = vmatmul.mubr.f32.gmra.mrb[0].mxu0 %v624
      %v692 = vpop.f32.mrb[0].mxu0
      %v693 = vadd.f32 0.0, %v692
      %v694 = vpop.f32.mrb[0].mxu0
      %v695 = vadd.f32 0.0, %v694
      %696 = vdwg.mxu0
      %v697 = vadd.f32 %v620, %v693
      %v698 = vadd.f32 %v621, %v695
      %v699 = vld [vmem:[#allocation2 + $0x8] sm:$0xff]
      %v700 = vld [vmem:[#allocation2 + $0x10] sm:$0xff]
      %v701 = vld [vmem:[#allocation2 + $0x18] sm:$0xff]
      %702 = vrot.lane.b32.xlu0 %v235, 88
      %v703 = vpop.permute.xlu0 %702
      %707 = vrot.lane.b32.xlu0 %v699, 127
      %v708 = vpop.permute.xlu0 %707
      %709 = vrot.lane.b32.xlu0 %v700, 127
      %v710 = vpop.permute.xlu0 %709
      %711 = vrot.lane.b32.xlu0 %v701, 127
      %v712 = vpop.permute.xlu0 %711
      %vm713 = vcmask 1039360
      %v714 = vsel %vm713, %v708, %v710
      %v715 = vsel %vm713, %v710, %v712
      %v718 = vsel %vm253, %v703, 0
      %720 = vmatprep.subr.mxu0 %v715
      %721 = vmatpush1.msra.mxu0 %v714
      %722 = vmatprep.subr.mxu0 0.0
      %723 = vmatpush1.msra.mxu0 0.0
      %724 = vmatprep.subr.mxu0 0.0
      %725 = vmatpush1.msra.mxu0 0.0
      %726 = vmatprep.subr.mxu0 0.0
      %727 = vmatpush1.msra.mxu0 0.0
      %728 = vmatprep.subr.mxu0 0.0
      %729 = vmatpush1.msra.mxu0 0.0
      %730 = vmatprep.subr.mxu0 0.0
      %731 = vmatpush1.msra.mxu0 0.0
      %732 = vmatprep.subr.mxu0 0.0
      %733 = vmatpush1.msra.mxu0 0.0
      %734 = vmatprep.subr.mxu0 0.0
      %735 = vmatpush1.msra.mxu0 0.0
      %736 = vmatprep.subr.mxu0 0.0
      %737 = vmatpush1.msra.mxu0 0.0
      %738 = vmatprep.subr.mxu0 0.0
      %739 = vmatpush1.msra.mxu0 0.0
      %740 = vmatprep.subr.mxu0 0.0
      %741 = vmatpush1.msra.mxu0 0.0
      %742 = vmatprep.subr.mxu0 0.0
      %743 = vmatpush1.msra.mxu0 0.0
      %744 = vmatprep.subr.mxu0 0.0
      %745 = vmatpush1.msra.mxu0 0.0
      %746 = vmatprep.subr.mxu0 0.0
      %747 = vmatpush1.msra.mxu0 0.0
      %748 = vmatprep.subr.mxu0 0.0
      %749 = vmatpush1.msra.mxu0 0.0
      %750 = vmatprep.subr.mxu0 0.0
      %751 = vmatpush1.msra.mxu0 0.0
      %752 = vmatprep.subr.mxu0 0.0
      %753 = vmatpush1.msra.mxu0 0.0
      %754 = vmatprep.subr.mxu0 0.0
      %755 = vmatpush1.msra.mxu0 0.0
      %756 = vmatprep.subr.mxu0 0.0
      %757 = vmatpush1.msra.mxu0 0.0
      %758 = vmatprep.subr.mxu0 0.0
      %759 = vmatpush1.msra.mxu0 0.0
      %760 = vmatprep.subr.mxu0 0.0
      %761 = vmatpush1.msra.mxu0 0.0
      %762 = vmatprep.subr.mxu0 0.0
      %763 = vmatpush1.msra.mxu0 0.0
      %764 = vmatprep.subr.mxu0 0.0
      %765 = vmatpush1.msra.mxu0 0.0
      %766 = vmatprep.subr.mxu0 0.0
      %767 = vmatpush1.msra.mxu0 0.0
      %768 = vmatprep.subr.mxu0 0.0
      %769 = vmatpush1.msra.mxu0 0.0
      %770 = vmatprep.subr.mxu0 0.0
      %771 = vmatpush1.msra.mxu0 0.0
      %772 = vmatprep.subr.mxu0 0.0
      %773 = vmatpush1.msra.mxu0 0.0
      %774 = vmatprep.subr.mxu0 0.0
      %775 = vmatpush1.msra.mxu0 0.0
      %776 = vmatprep.subr.mxu0 0.0
      %777 = vmatpush1.msra.mxu0 0.0
      %778 = vmatprep.subr.mxu0 0.0
      %779 = vmatpush1.msra.mxu0 0.0
      %780 = vmatprep.subr.mxu0 0.0
      %781 = vmatpush1.msra.mxu0 0.0
      %782 = vmatprep.subr.mxu0 0.0
      %783 = vmatpush1.msra.mxu0 0.0
      %784 = vmatprep.mubr.f32.mxu0 0.0
      %785 = vmatmul.mubr.f32.gmra.mrb[0].mxu0 %v718
      %v786 = vpop.f32.mrb[0].mxu0
      %v787 = vadd.f32 0.0, %v786
      %v788 = vpop.f32.mrb[0].mxu0
      %v789 = vadd.f32 0.0, %v788
      %790 = vdwg.mxu0
      %v791 = vmul.f32 %v787, %v521
      %v792 = vmul.f32 %v789, %v525
      %v793 = vadd.f32 %v697, %v791
      %v794 = vadd.f32 %v698, %v792
      %795 = vrot.lane.b32.xlu0 %v235, 80
      %v796 = vpop.permute.xlu0 %795
      %797 = vrot.lane.b32.xlu0 %v699, 113
      %v798 = vpop.permute.xlu0 %797
      %799 = vrot.lane.b32.xlu0 %v700, 113
      %v800 = vpop.permute.xlu0 %799
      %801 = vrot.lane.b32.xlu0 %v701, 113
      %v802 = vpop.permute.xlu0 %801
      %vm803 = vcmask 924672
      %v804 = vsel %vm803, %v798, %v800
      %v805 = vsel %vm803, %v800, %v802
      %v808 = vsel %vm253, %v796, 0
      %810 = vmatprep.subr.mxu0 %v805
      %811 = vmatpush1.msra.mxu0 %v804
      %812 = vmatprep.subr.mxu0 0.0
      %813 = vmatpush1.msra.mxu0 0.0
      %814 = vmatprep.subr.mxu0 0.0
      %815 = vmatpush1.msra.mxu0 0.0
      %816 = vmatprep.subr.mxu0 0.0
      %817 = vmatpush1.msra.mxu0 0.0
      %818 = vmatprep.subr.mxu0 0.0
      %819 = vmatpush1.msra.mxu0 0.0
      %820 = vmatprep.subr.mxu0 0.0
      %821 = vmatpush1.msra.mxu0 0.0
      %822 = vmatprep.subr.mxu0 0.0
      %823 = vmatpush1.msra.mxu0 0.0
      %824 = vmatprep.subr.mxu0 0.0
      %825 = vmatpush1.msra.mxu0 0.0
      %826 = vmatprep.subr.mxu0 0.0
      %827 = vmatpush1.msra.mxu0 0.0
      %828 = vmatprep.subr.mxu0 0.0
      %829 = vmatpush1.msra.mxu0 0.0
      %830 = vmatprep.subr.mxu0 0.0
      %831 = vmatpush1.msra.mxu0 0.0
      %832 = vmatprep.subr.mxu0 0.0
      %833 = vmatpush1.msra.mxu0 0.0
      %834 = vmatprep.subr.mxu0 0.0
      %835 = vmatpush1.msra.mxu0 0.0
      %836 = vmatprep.subr.mxu0 0.0
      %837 = vmatpush1.msra.mxu0 0.0
      %838 = vmatprep.subr.mxu0 0.0
      %839 = vmatpush1.msra.mxu0 0.0
      %840 = vmatprep.subr.mxu0 0.0
      %841 = vmatpush1.msra.mxu0 0.0
      %842 = vmatprep.subr.mxu0 0.0
      %843 = vmatpush1.msra.mxu0 0.0
      %844 = vmatprep.subr.mxu0 0.0
      %845 = vmatpush1.msra.mxu0 0.0
      %846 = vmatprep.subr.mxu0 0.0
      %847 = vmatpush1.msra.mxu0 0.0
      %848 = vmatprep.subr.mxu0 0.0
      %849 = vmatpush1.msra.mxu0 0.0
      %850 = vmatprep.subr.mxu0 0.0
      %851 = vmatpush1.msra.mxu0 0.0
      %852 = vmatprep.subr.mxu0 0.0
      %853 = vmatpush1.msra.mxu0 0.0
      %854 = vmatprep.subr.mxu0 0.0
      %855 = vmatpush1.msra.mxu0 0.0
      %856 = vmatprep.subr.mxu0 0.0
      %857 = vmatpush1.msra.mxu0 0.0
      %858 = vmatprep.subr.mxu0 0.0
      %859 = vmatpush1.msra.mxu0 0.0
      %860 = vmatprep.subr.mxu0 0.0
      %861 = vmatpush1.msra.mxu0 0.0
      %862 = vmatprep.subr.mxu0 0.0
      %863 = vmatpush1.msra.mxu0 0.0
      %864 = vmatprep.subr.mxu0 0.0
      %865 = vmatpush1.msra.mxu0 0.0
      %866 = vmatprep.subr.mxu0 0.0
      %867 = vmatpush1.msra.mxu0 0.0
      %868 = vmatprep.subr.mxu0 0.0
      %869 = vmatpush1.msra.mxu0 0.0
      %870 = vmatprep.subr.mxu0 0.0
      %871 = vmatpush1.msra.mxu0 0.0
      %872 = vmatprep.subr.mxu0 0.0
      %873 = vmatpush1.msra.mxu0 0.0
      %874 = vmatprep.mubr.f32.mxu0 0.0
      %875 = vmatmul.mubr.f32.gmra.mrb[0].mxu0 %v808
      %v876 = vpop.f32.mrb[0].mxu0
      %v877 = vadd.f32 0.0, %v876
      %v878 = vpop.f32.mrb[0].mxu0
      %v879 = vadd.f32 0.0, %v878
      %880 = vdwg.mxu0
      %v881 = vmul.f32 %v877, %v332
      %v882 = vmul.f32 %v879, %v336
      %v883 = vadd.f32 %v793, %v881
      %v884 = vadd.f32 %v794, %v882
      %885 = vrot.lane.b32.xlu0 %v235, 72
      %v886 = vpop.permute.xlu0 %885
      %887 = vrot.lane.b32.xlu0 %v699, 112
      %v888 = vpop.permute.xlu0 %887
      %889 = vrot.lane.b32.xlu0 %v700, 112
      %v890 = vpop.permute.xlu0 %889
      %891 = vrot.lane.b32.xlu0 %v701, 112
      %v892 = vpop.permute.xlu0 %891
      %vm893 = vcmask 916480
      %v894 = vsel %vm893, %v888, %v890
      %v895 = vsel %vm893, %v890, %v892
      %v898 = vsel %vm253, %v886, 0
      %900 = vmatprep.subr.mxu0 %v895
      %901 = vmatpush1.msra.mxu0 %v894
      %902 = vmatprep.subr.mxu0 0.0
      %903 = vmatpush1.msra.mxu0 0.0
      %904 = vmatprep.subr.mxu0 0.0
      %905 = vmatpush1.msra.mxu0 0.0
      %906 = vmatprep.subr.mxu0 0.0
      %907 = vmatpush1.msra.mxu0 0.0
      %908 = vmatprep.subr.mxu0 0.0
      %909 = vmatpush1.msra.mxu0 0.0
      %910 = vmatprep.subr.mxu0 0.0
      %911 = vmatpush1.msra.mxu0 0.0
      %912 = vmatprep.subr.mxu0 0.0
      %913 = vmatpush1.msra.mxu0 0.0
      %914 = vmatprep.subr.mxu0 0.0
      %915 = vmatpush1.msra.mxu0 0.0
      %916 = vmatprep.subr.mxu0 0.0
      %917 = vmatpush1.msra.mxu0 0.0
      %918 = vmatprep.subr.mxu0 0.0
      %919 = vmatpush1.msra.mxu0 0.0
      %920 = vmatprep.subr.mxu0 0.0
      %921 = vmatpush1.msra.mxu0 0.0
      %922 = vmatprep.subr.mxu0 0.0
      %923 = vmatpush1.msra.mxu0 0.0
      %924 = vmatprep.subr.mxu0 0.0
      %925 = vmatpush1.msra.mxu0 0.0
      %926 = vmatprep.subr.mxu0 0.0
      %927 = vmatpush1.msra.mxu0 0.0
      %928 = vmatprep.subr.mxu0 0.0
      %929 = vmatpush1.msra.mxu0 0.0
      %930 = vmatprep.subr.mxu0 0.0
      %931 = vmatpush1.msra.mxu0 0.0
      %932 = vmatprep.subr.mxu0 0.0
      %933 = vmatpush1.msra.mxu0 0.0
      %934 = vmatprep.subr.mxu0 0.0
      %935 = vmatpush1.msra.mxu0 0.0
      %936 = vmatprep.subr.mxu0 0.0
      %937 = vmatpush1.msra.mxu0 0.0
      %938 = vmatprep.subr.mxu0 0.0
      %939 = vmatpush1.msra.mxu0 0.0
      %940 = vmatprep.subr.mxu0 0.0
      %941 = vmatpush1.msra.mxu0 0.0
      %942 = vmatprep.subr.mxu0 0.0
      %943 = vmatpush1.msra.mxu0 0.0
      %944 = vmatprep.subr.mxu0 0.0
      %945 = vmatpush1.msra.mxu0 0.0
      %946 = vmatprep.subr.mxu0 0.0
      %947 = vmatpush1.msra.mxu0 0.0
      %948 = vmatprep.subr.mxu0 0.0
      %949 = vmatpush1.msra.mxu0 0.0
      %950 = vmatprep.subr.mxu0 0.0
      %951 = vmatpush1.msra.mxu0 0.0
      %952 = vmatprep.subr.mxu0 0.0
      %953 = vmatpush1.msra.mxu0 0.0
      %954 = vmatprep.subr.mxu0 0.0
      %955 = vmatpush1.msra.mxu0 0.0
      %956 = vmatprep.subr.mxu0 0.0
      %957 = vmatpush1.msra.mxu0 0.0
      %958 = vmatprep.subr.mxu0 0.0
      %959 = vmatpush1.msra.mxu0 0.0
      %960 = vmatprep.subr.mxu0 0.0
      %961 = vmatpush1.msra.mxu0 0.0
      %962 = vmatprep.subr.mxu0 0.0
      %963 = vmatpush1.msra.mxu0 0.0
      %964 = vmatprep.mubr.f32.mxu0 0.0
      %965 = vmatmul.mubr.f32.gmra.mrb[0].mxu0 %v898
      %v966 = vpop.f32.mrb[0].mxu0
      %v967 = vadd.f32 0.0, %v966
      %v968 = vpop.f32.mrb[0].mxu0
      %v969 = vadd.f32 0.0, %v968
      %970 = vdwg.mxu0
      %v971 = vadd.f32 %v883, %v967
      %v972 = vadd.f32 %v884, %v969
      %973 = vrot.lane.b32.xlu0 %v235, 64
      %v974 = vpop.permute.xlu0 %973
      %975 = vrot.lane.b32.xlu0 %v699, 111
      %v976 = vpop.permute.xlu0 %975
      %977 = vrot.lane.b32.xlu0 %v700, 111
      %v978 = vpop.permute.xlu0 %977
      %979 = vrot.lane.b32.xlu0 %v701, 111
      %v980 = vpop.permute.xlu0 %979
      %vm981 = vcmask 908288
      %v982 = vsel %vm981, %v976, %v978
      %v983 = vsel %vm981, %v978, %v980
      %v986 = vsel %vm253, %v974, 0
      %988 = vmatprep.subr.mxu0 %v983
      %989 = vmatpush1.msra.mxu0 %v982
      %990 = vmatprep.subr.mxu0 0.0
      %991 = vmatpush1.msra.mxu0 0.0
      %992 = vmatprep.subr.mxu0 0.0
      %993 = vmatpush1.msra.mxu0 0.0
      %994 = vmatprep.subr.mxu0 0.0
      %995 = vmatpush1.msra.mxu0 0.0
      %996 = vmatprep.subr.mxu0 0.0
      %997 = vmatpush1.msra.mxu0 0.0
      %998 = vmatprep.subr.mxu0 0.0
      %999 = vmatpush1.msra.mxu0 0.0
      %1000 = vmatprep.subr.mxu0 0.0
      %1001 = vmatpush1.msra.mxu0 0.0
      %1002 = vmatprep.subr.mxu0 0.0
      %1003 = vmatpush1.msra.mxu0 0.0
      %1004 = vmatprep.subr.mxu0 0.0
      %1005 = vmatpush1.msra.mxu0 0.0
      %1006 = vmatprep.subr.mxu0 0.0
      %1007 = vmatpush1.msra.mxu0 0.0
      %1008 = vmatprep.subr.mxu0 0.0
      %1009 = vmatpush1.msra.mxu0 0.0
      %1010 = vmatprep.subr.mxu0 0.0
      %1011 = vmatpush1.msra.mxu0 0.0
      %1012 = vmatprep.subr.mxu0 0.0
      %1013 = vmatpush1.msra.mxu0 0.0
      %1014 = vmatprep.subr.mxu0 0.0
      %1015 = vmatpush1.msra.mxu0 0.0
      %1016 = vmatprep.subr.mxu0 0.0
      %1017 = vmatpush1.msra.mxu0 0.0
      %1018 = vmatprep.subr.mxu0 0.0
      %1019 = vmatpush1.msra.mxu0 0.0
      %1020 = vmatprep.subr.mxu0 0.0
      %1021 = vmatpush1.msra.mxu0 0.0
      %1022 = vmatprep.subr.mxu0 0.0
      %1023 = vmatpush1.msra.mxu0 0.0
      %1024 = vmatprep.subr.mxu0 0.0
      %1025 = vmatpush1.msra.mxu0 0.0
      %1026 = vmatprep.subr.mxu0 0.0
      %1027 = vmatpush1.msra.mxu0 0.0
      %1028 = vmatprep.subr.mxu0 0.0
      %1029 = vmatpush1.msra.mxu0 0.0
      %1030 = vmatprep.subr.mxu0 0.0
      %1031 = vmatpush1.msra.mxu0 0.0
      %1032 = vmatprep.subr.mxu0 0.0
      %1033 = vmatpush1.msra.mxu0 0.0
      %1034 = vmatprep.subr.mxu0 0.0
      %1035 = vmatpush1.msra.mxu0 0.0
      %1036 = vmatprep.subr.mxu0 0.0
      %1037 = vmatpush1.msra.mxu0 0.0
      %1038 = vmatprep.subr.mxu0 0.0
      %1039 = vmatpush1.msra.mxu0 0.0
      %1040 = vmatprep.subr.mxu0 0.0
      %1041 = vmatpush1.msra.mxu0 0.0
      %1042 = vmatprep.subr.mxu0 0.0
      %1043 = vmatpush1.msra.mxu0 0.0
      %1044 = vmatprep.subr.mxu0 0.0
      %1045 = vmatpush1.msra.mxu0 0.0
      %1046 = vmatprep.subr.mxu0 0.0
      %1047 = vmatpush1.msra.mxu0 0.0
      %1048 = vmatprep.subr.mxu0 0.0
      %1049 = vmatpush1.msra.mxu0 0.0
      %1050 = vmatprep.subr.mxu0 0.0
      %1051 = vmatpush1.msra.mxu0 0.0
      %1052 = vmatprep.mubr.f32.mxu0 0.0
      %1053 = vmatmul.mubr.f32.gmra.mrb[0].mxu0 %v986
      %v1054 = vpop.f32.mrb[0].mxu0
      %v1055 = vadd.f32 0.0, %v1054
      %v1056 = vpop.f32.mrb[0].mxu0
      %v1057 = vadd.f32 0.0, %v1056
      %1058 = vdwg.mxu0
      %v1059 = vmul.f32 %v1055, %v521
      %v1060 = vmul.f32 %v1057, %v525
      %v1061 = vadd.f32 %v971, %v1059
      %v1062 = vadd.f32 %v972, %v1060
      %v1063 = vadd.f32 %v1061, %v1062
      %1064 = vadd.xlane.f32.xlu0 %v1063
      %v1065 = vpop.xlane.xlu0 %1064
      %v1066 = vmul.f32 %v1065, 0.00390625
      %v1067 = vsub.f32 %v1061, %v1066
      %v1068 = vsub.f32 %v1062, %v1066
      %v1069 = vmul.f32 %v1067, %v1067
      %v1070 = vmul.f32 %v1068, %v1068
      %v1071 = vadd.f32 %v1069, %v1070
      %1072 = vadd.xlane.f32.xlu0 %v1071
      %v1073 = vpop.xlane.xlu0 %1072
      %v1074 = vmul.f32 %v1073, 0.00390625
      %v1075 = vadd.f32 %v1074, 1e-05
      %v1076 = vrsqrt.pop %v1075
      %v1077 = vmul.f32 %v1067, %v1076
      %v1078 = vmul.f32 %v1068, %v1076
      %v1079 = vmax.f32 %v1077, 0.0
      %v1080 = vmax.f32 %v1078, 0.0
      %v1083 = vcombine.low %v1079, %v1080
      %1085 = vst [vmem:[%s217] sm:$0xff] %v1083
      %p1086 = scmp.lt.s32.totalorder %s15, 1
      %s1087 = scalar_select %p1086, %s15, 1
      %s1088 = smul.addr %s1087, 2
      %s1089 = smul.addr %s1088, 4
      %s1090 = scalar_lea.vmem %s4, %s1089
      // Predicated region
      $region37: #{upsample_forward.1} parent=35 // pred_check
        %p1091 = pneg %p127
      $region38: #{upsample_forward.1} parent=35 // pred_check_branch
        %1093 = sbr.rel (%p1091) target = $region40
      $region39: #{upsample_forward.1} parent=35 // pred_region
        _
      $region40: #{upsample_forward.1} parent=35 // pred_fallthru
        _
    $region36: #{upsample_forward.1} parent=5 // pred_fallthru
      _
    %p1094 = scmp.le.s32.totalorder 2, %s10
    // Predicated region
    $region41: #{upsample_forward.1} parent=5 // pred_check
      %p1095 = pneg %p1094
    $region42: #{upsample_forward.1} parent=5 // pred_check_branch
      %1097 = sbr.rel (%p1095) target = $region44
    $region43: #{upsample_forward.1} parent=5 // pred_region
      %s1098 = ssub.s32 %s10, 2
      // Predicated region
      $region45: #{upsample_forward.1} parent=43 // pred_check
        %p1099 = pneg %p133
      $region46: #{upsample_forward.1} parent=43 // pred_check_branch
        %1101 = sbr.rel (%p1099) target = $region48
      $region47: #{upsample_forward.1} parent=43 // pred_region
        %p1102 = scmp.lt.s32.totalorder %s16, 1
        %s1103 = scalar_select %p1102, %s16, 1
        %s1104 = smul.addr %s1103, 2
        %s1105 = smul.addr %s1104, 4
        %s1106 = scalar_lea.vmem %s4, %s1105
      $region48: #{upsample_forward.1} parent=43 // pred_fallthru
        _
    $region44: #{upsample_forward.1} parent=5 // pred_fallthru
      _
  $region6: #{upsample_forward.1} parent=0 // loop_footer
    %s14 = sadd.s32 1, %s10
  $region7: #{upsample_forward.1} parent=0 // loop_footer_branch
    %9 = sbr.rel target = $region3
  $region8: #{upsample_forward.1} parent=0 // loop_exit
    _

</llo_original>
